<compile_context>
chip_gen: v6e
topology: v6e:2x2x1
jax: 0.10.0
libtpu: 0.0.40
codegen_flags: <defaults>
</compile_context>

<pallas_src>
import functools

import jax
import jax.numpy as jnp
from jax.experimental import pallas as pl
from jax.experimental.pallas import tpu as pltpu  # noqa: F401  (TPU backend)

LANE = 128


def mlp_kernel(x_ref, w_ref, b_ref, o_ref, outs_ref, *, n_layers, out_f):
    # x_ref:    (B, in_f)        f32  (unpadded input)
    # w_ref:    (L, in_f, Fp)    f32  ((in, out) layout, out dim zero-padded)
    # b_ref:    (L, 1, Fp)       f32  (zero-padded)
    # o_ref:    (B, out_f)       f32  (final output, unpadded)
    # outs_ref: (L, B, out_f)    f32  (per-layer outputs == get_layter_out_list)
    act = x_ref[...].astype(jnp.float32)                      # (B, in_f)
    for l in range(n_layers):                                 # static unroll (L small)
        h = jnp.dot(act, w_ref[l],
                    preferred_element_type=jnp.float32)       # (B, Fp), f32 MXU
        h = jnp.maximum(h + b_ref[l], 0.0)                    # bias + ReLU (f32 VPU)
        act = h[:, :out_f]                                    # drop zero-pad lanes
        outs_ref[l] = act                                     # layer-out list entry
    o_ref[...] = act                                          # final output


def init_custum_init_net_params(weights, biases):
    """One-time parameter prep (hoisted out of the per-forward path).

    weights: (L, out_f, in_f) in torch nn.Linear layout; biases: (L, out_f).
    Returns w_pad: (L, in_f, Fp) f32 (transposed to (in, out), output dim
    zero-padded to a lane multiple) and b_pad: (L, 1, Fp) f32.
    """
    n_layers, out_f, in_f = weights.shape
    assert in_f == out_f, "layer chaining requires in_features == out_features"
    Fp = max(LANE, ((out_f + LANE - 1) // LANE) * LANE)       # lane-dense output dim
    w_t = jnp.transpose(weights, (0, 2, 1)).astype(jnp.float32)          # (L, in, out)
    w_pad = jnp.zeros((n_layers, in_f, Fp), jnp.float32).at[:, :, :out_f].set(w_t)
    b_pad = jnp.zeros((n_layers, 1, Fp), jnp.float32).at[:, 0, :out_f].set(
        biases.astype(jnp.float32))
    return w_pad, b_pad


@jax.jit
def custum_init_net_forward(x, w_pad, b_pad):
    """Returns (final_out, per_layer_outs), matching forward() + get_layter_out_list()."""
    n_layers, in_f, Fp = w_pad.shape
    out_f = in_f                      # chaining requires in_features == out_features
    B = x.shape[0]

    out, layer_outs = pl.pallas_call(
        functools.partial(mlp_kernel, n_layers=n_layers, out_f=out_f),
        out_shape=(
            jax.ShapeDtypeStruct((B, out_f), jnp.float32),             # final out (pinned f32)
            jax.ShapeDtypeStruct((n_layers, B, out_f), jnp.float32),   # layer-out list
        ),
        in_specs=[
            pl.BlockSpec((B, in_f), lambda: (0, 0)),                # x, unpadded (full block)
            pl.BlockSpec((n_layers, in_f, Fp), lambda: (0, 0, 0)),  # whole weight stack (VMEM)
            pl.BlockSpec((n_layers, 1, Fp), lambda: (0, 0, 0)),     # whole bias stack
        ],
        out_specs=(
            pl.BlockSpec((B, out_f), lambda: (0, 0)),
            pl.BlockSpec((n_layers, B, out_f), lambda: (0, 0, 0)),
        ),
    )(x, w_pad, b_pad)
    return out, layer_outs


def reference_forward(x, weights, biases):
    """Pure-JAX f32 reference with PyTorch semantics: out = relu(x @ W^T + b)."""
    out = x.astype(jnp.float32)
    outs = []
    for l in range(weights.shape[0]):
        out = jnp.maximum(
            jnp.dot(out, weights[l].T, precision=jax.lax.Precision.HIGHEST)
            + biases[l], 0.0)
        outs.append(out)
    return out, jnp.stack(outs)


if __name__ == "__main__":
    # Small shapes consistent with the module: n_layers=3, in=out=hidden=32, batch=8.
    n_layers, hidden, batch = 3, 32, 8

    key = jax.random.PRNGKey(0)
    kx, kw = jax.random.split(key)

    x = jax.random.normal(kx, (batch, hidden), dtype=jnp.float32)
    # Deterministic "func_init_weight": scaled normal; biases zero (nn.init.zeros_).
    weights = (jax.random.normal(kw, (n_layers, hidden, hidden), dtype=jnp.float32)
               / jnp.sqrt(jnp.float32(hidden)))
    biases = jnp.zeros((n_layers, hidden), dtype=jnp.float32)

    # One-time init (hoisted out of the per-forward path, per perf review).
    w_pad, b_pad = jax.block_until_ready(init_custum_init_net_params(weights, biases))

    out, layer_outs = custum_init_net_forward(x, w_pad, b_pad)
    out, layer_outs = jax.block_until_ready((out, layer_outs))

    ref_out, ref_layers = reference_forward(x, weights, biases)
    assert out.shape == (batch, hidden)
    assert layer_outs.shape == (n_layers, batch, hidden)
    # The f32 MXU path should match the f32 reference to ~1e-6; the looser
    # bound also covers a possible bf16-pass decomposition of the f32 matmul
    # while still catching structural errors (wrong transpose / bias /
    # chaining would be O(1) off).
    err = float(jnp.max(jnp.abs(out - ref_out)))
    err_layers = float(jnp.max(jnp.abs(layer_outs - ref_layers)))
    assert jnp.allclose(out, ref_out, atol=1e-2, rtol=1e-2), err
    assert jnp.allclose(layer_outs, ref_layers, atol=1e-2, rtol=1e-2), err_layers

    print("KERNEL_OK")
</pallas_src>

<mosaic_0001>
module attributes {stable_mosaic.version = 11 : i64} {
  func.func @mlp_kernel(%arg0: memref<8x32xf32, #tpu.memory_space<vmem>>, %arg1: memref<3x32x128xf32, #tpu.memory_space<vmem>>, %arg2: memref<3x1x128xf32, #tpu.memory_space<vmem>>, %arg3: memref<8x32xf32, #tpu.memory_space<vmem>>, %arg4: memref<3x8x32xf32, #tpu.memory_space<vmem>>) attributes {dimension_semantics = [], scalar_prefetch = 0 : i64, scratch_operands = 0 : i64, tpu.core_type = #tpu.core_type<tc>} {
    %c0 = arith.constant 0 : index
    %c0_0 = arith.constant 0 : index
    %0 = vector.load %arg0[%c0, %c0_0] : memref<8x32xf32, #tpu.memory_space<vmem>>, vector<8x32xf32>
    %c0_1 = arith.constant 0 : index
    %c0_2 = arith.constant 0 : index
    %c0_3 = arith.constant 0 : index
    %1 = vector.load %arg1[%c0_1, %c0_2, %c0_3] : memref<3x32x128xf32, #tpu.memory_space<vmem>>, vector<1x32x128xf32>
    %2 = vector.shape_cast %1 : vector<1x32x128xf32> to vector<32x128xf32>
    %cst = arith.constant dense<0.000000e+00> : vector<8x128xf32>
    %3 = tpu.matmul %0, %2, %cst {dimension_numbers = #tpu.dot_dimension_numbers<[1], [0], [0], [1], [0, 0, 1, 1], [], []>} : vector<8x32xf32>, vector<32x128xf32>, vector<8x128xf32> -> vector<8x128xf32>
    %c0_4 = arith.constant 0 : index
    %c0_5 = arith.constant 0 : index
    %c0_6 = arith.constant 0 : index
    %4 = vector.load %arg2[%c0_4, %c0_5, %c0_6] : memref<3x1x128xf32, #tpu.memory_space<vmem>>, vector<1x1x128xf32>
    %5 = vector.shape_cast %4 : vector<1x1x128xf32> to vector<1x128xf32>
    %6 = vector.broadcast %5 : vector<1x128xf32> to vector<8x128xf32>
    %7 = arith.addf %3, %6 : vector<8x128xf32>
    %cst_7 = arith.constant 0.000000e+00 : f32
    %8 = vector.broadcast %cst_7 : f32 to vector<8x128xf32>
    %9 = arith.maximumf %7, %8 : vector<8x128xf32>
    %10 = vector.extract_strided_slice %9 {offsets = [0, 0], sizes = [8, 32], strides = [1, 1]} : vector<8x128xf32> to vector<8x32xf32>
    %c0_8 = arith.constant 0 : index
    %c0_9 = arith.constant 0 : index
    %c0_10 = arith.constant 0 : index
    %11 = vector.load %arg4[%c0_8, %c0_9, %c0_10] : memref<3x8x32xf32, #tpu.memory_space<vmem>>, vector<1x8x32xf32>
    %12 = vector.shape_cast %11 : vector<1x8x32xf32> to vector<8x32xf32>
    %13 = vector.shape_cast %10 : vector<8x32xf32> to vector<1x8x32xf32>
    tpu.vector_store %arg4[%c0_8, %c0_9, %c0_10], %13 {strides = array<i32>} : memref<3x8x32xf32, #tpu.memory_space<vmem>>, vector<1x8x32xf32>,
    %c1 = arith.constant 1 : index
    %c0_11 = arith.constant 0 : index
    %c0_12 = arith.constant 0 : index
    %14 = vector.load %arg1[%c1, %c0_11, %c0_12] : memref<3x32x128xf32, #tpu.memory_space<vmem>>, vector<1x32x128xf32>
    %15 = vector.shape_cast %14 : vector<1x32x128xf32> to vector<32x128xf32>
    %cst_13 = arith.constant dense<0.000000e+00> : vector<8x128xf32>
    %16 = tpu.matmul %10, %15, %cst_13 {dimension_numbers = #tpu.dot_dimension_numbers<[1], [0], [0], [1], [0, 0, 1, 1], [], []>} : vector<8x32xf32>, vector<32x128xf32>, vector<8x128xf32> -> vector<8x128xf32>
    %c1_14 = arith.constant 1 : index
    %c0_15 = arith.constant 0 : index
    %c0_16 = arith.constant 0 : index
    %17 = vector.load %arg2[%c1_14, %c0_15, %c0_16] : memref<3x1x128xf32, #tpu.memory_space<vmem>>, vector<1x1x128xf32>
    %18 = vector.shape_cast %17 : vector<1x1x128xf32> to vector<1x128xf32>
    %19 = vector.broadcast %18 : vector<1x128xf32> to vector<8x128xf32>
    %20 = arith.addf %16, %19 : vector<8x128xf32>
    %cst_17 = arith.constant 0.000000e+00 : f32
    %21 = vector.broadcast %cst_17 : f32 to vector<8x128xf32>
    %22 = arith.maximumf %20, %21 : vector<8x128xf32>
    %23 = vector.extract_strided_slice %22 {offsets = [0, 0], sizes = [8, 32], strides = [1, 1]} : vector<8x128xf32> to vector<8x32xf32>
    %c1_18 = arith.constant 1 : index
    %c0_19 = arith.constant 0 : index
    %c0_20 = arith.constant 0 : index
    %24 = vector.load %arg4[%c1_18, %c0_19, %c0_20] : memref<3x8x32xf32, #tpu.memory_space<vmem>>, vector<1x8x32xf32>
    %25 = vector.shape_cast %24 : vector<1x8x32xf32> to vector<8x32xf32>
    %26 = vector.shape_cast %23 : vector<8x32xf32> to vector<1x8x32xf32>
    tpu.vector_store %arg4[%c1_18, %c0_19, %c0_20], %26 {strides = array<i32>} : memref<3x8x32xf32, #tpu.memory_space<vmem>>, vector<1x8x32xf32>,
    %c2 = arith.constant 2 : index
    %c0_21 = arith.constant 0 : index
    %c0_22 = arith.constant 0 : index
    %27 = vector.load %arg1[%c2, %c0_21, %c0_22] : memref<3x32x128xf32, #tpu.memory_space<vmem>>, vector<1x32x128xf32>
    %28 = vector.shape_cast %27 : vector<1x32x128xf32> to vector<32x128xf32>
    %cst_23 = arith.constant dense<0.000000e+00> : vector<8x128xf32>
    %29 = tpu.matmul %23, %28, %cst_23 {dimension_numbers = #tpu.dot_dimension_numbers<[1], [0], [0], [1], [0, 0, 1, 1], [], []>} : vector<8x32xf32>, vector<32x128xf32>, vector<8x128xf32> -> vector<8x128xf32>
    %c2_24 = arith.constant 2 : index
    %c0_25 = arith.constant 0 : index
    %c0_26 = arith.constant 0 : index
    %30 = vector.load %arg2[%c2_24, %c0_25, %c0_26] : memref<3x1x128xf32, #tpu.memory_space<vmem>>, vector<1x1x128xf32>
    %31 = vector.shape_cast %30 : vector<1x1x128xf32> to vector<1x128xf32>
    %32 = vector.broadcast %31 : vector<1x128xf32> to vector<8x128xf32>
    %33 = arith.addf %29, %32 : vector<8x128xf32>
    %cst_27 = arith.constant 0.000000e+00 : f32
    %34 = vector.broadcast %cst_27 : f32 to vector<8x128xf32>
    %35 = arith.maximumf %33, %34 : vector<8x128xf32>
    %36 = vector.extract_strided_slice %35 {offsets = [0, 0], sizes = [8, 32], strides = [1, 1]} : vector<8x128xf32> to vector<8x32xf32>
    %c2_28 = arith.constant 2 : index
    %c0_29 = arith.constant 0 : index
    %c0_30 = arith.constant 0 : index
    %37 = vector.load %arg4[%c2_28, %c0_29, %c0_30] : memref<3x8x32xf32, #tpu.memory_space<vmem>>, vector<1x8x32xf32>
    %38 = vector.shape_cast %37 : vector<1x8x32xf32> to vector<8x32xf32>
    %39 = vector.shape_cast %36 : vector<8x32xf32> to vector<1x8x32xf32>
    tpu.vector_store %arg4[%c2_28, %c0_29, %c0_30], %39 {strides = array<i32>} : memref<3x8x32xf32, #tpu.memory_space<vmem>>, vector<1x8x32xf32>,
    %c0_31 = arith.constant 0 : index
    %c0_32 = arith.constant 0 : index
    %40 = vector.load %arg3[%c0_31, %c0_32] : memref<8x32xf32, #tpu.memory_space<vmem>>, vector<8x32xf32>
    tpu.vector_store %arg3[%c0_31, %c0_32], %36 {strides = array<i32>} : memref<8x32xf32, #tpu.memory_space<vmem>>, vector<8x32xf32>,
    return
  }
}

</mosaic_0001>

<llo_original>
// kernel: custum_init_net_forward.1
$region0: #{custum_init_net_forward.1}
  #allocation0 [shape = 'u32[]', space=smem, size = 0x4, offset = 0x4, fixed_abs, tag = 'smem constant byte address 0x4 - core index']
  #allocation1 [shape = 'u32[144,128]{1,0:T(1,128)}', space=vmem, size = 0x12000, scoped, tag = 'internal scratch']
  %s0 = inlined_call_operand.hbm [shape: f32[8,32], index: 0, kind: input, shape index: {}]
  %s1 = inlined_call_operand.hbm [shape: f32[3,32,128], index: 1, kind: input, shape index: {}]
  %s2 = inlined_call_operand.vmem [shape: f32[3,1,128], index: 2, kind: input, shape index: {}]
  %s3 = inlined_call_operand.hbm [shape: f32[8,32], index: 3, kind: output, shape index: {0}]
  %s4 = inlined_call_operand.hbm [shape: f32[3,8,32], index: 4, kind: output, shape index: {1}]
  %5 = xla_tuple %s3, %s4
  %s6 = sld [smem:[#allocation0]]
  $region38: #{custum_init_net_forward.1} parent=0
    _
  %s8 = ssub.s32 1, %s6
  %s9 = scalar_select 0, %s8, %s6
  $region1: #{custum_init_net_forward.1} parent=0
    #allocation2 [shape = 'u8[4096]{0}', space=vmem, size = 0x1000, scoped, tag = 'input window, operand 0, single buffered']
    #allocation3 [shape = 's32[1]{0}', space=sflag, size = 0x4, scoped, tag = 'scoped memory for custum_init_net_forward.1']
    #allocation4 [shape = 's32[1]{0}', space=sflag, size = 0x4, scoped, tag = 'scoped memory for custum_init_net_forward.1']
    #allocation5 [shape = 'u8[49152]{0}', space=vmem, size = 0xc000, scoped, tag = 'input window, operand 1, single buffered']
    #allocation6 [shape = 's32[1]{0}', space=sflag, size = 0x4, scoped, tag = 'scoped memory for custum_init_net_forward.1']
    #allocation7 [shape = 'u8[4096]{0}', space=vmem, size = 0x1000, scoped, tag = 'output window, operand 0, single buffered']
    #allocation8 [shape = 'u8[12288]{0}', space=vmem, size = 0x3000, scoped, tag = 'output window, operand 1, single buffered']
    #allocation9 [shape = 's32[1]{0}', space=sflag, size = 0x4, scoped, tag = 'scoped memory for custum_init_net_forward.1']
    %10 = vsyncpa [#allocation3], 0
    %11 = vsyncpa [#allocation6], 0
    %12 = vsyncpa [#allocation4], 0
    %13 = vsyncpa [#allocation9], 0
    // Predicated region
    $region2: #{custum_init_net_forward.1} parent=1 // pred_check
      _
    $region3: #{custum_init_net_forward.1} parent=1 // pred_check_branch
      %15 = sbr.rel (0) target = $region5
    $region4: #{custum_init_net_forward.1} parent=1 // pred_region
      %s17 = ssub.s32 128, 128
      %18 = vsyncadd [#allocation3], %s17
      %s20 = sshll.u32 [#allocation2], 4
      %s21 = int_to_ptr.vmem [resolvable:$true] %s20
      %23 = dma.hbm_to_vmem [thread:$0]  %s0, 128, %s21, [#allocation3]
    $region5: #{custum_init_net_forward.1} parent=1 // pred_fallthru
      _
    // Predicated region
    $region6: #{custum_init_net_forward.1} parent=1 // pred_check
      _
    $region7: #{custum_init_net_forward.1} parent=1 // pred_check_branch
      %25 = sbr.rel (0) target = $region9
    $region8: #{custum_init_net_forward.1} parent=1 // pred_region
      %s27 = ssub.s32 1536, 1536
      %28 = vsyncadd [#allocation6], %s27
      %s29 = sshll.u32 [#allocation5], 4
      %s30 = int_to_ptr.vmem [resolvable:$true] %s29
      %35 = dma.hbm_to_vmem [thread:$0]  %s1, 1536, %s30, [#allocation6], 128, 128, 8
    $region9: #{custum_init_net_forward.1} parent=1 // pred_fallthru
      _
    // Predicated region
    $region10: #{custum_init_net_forward.1} parent=1 // pred_check
      _
    $region11: #{custum_init_net_forward.1} parent=1 // pred_check_branch
      %37 = sbr.rel (0) target = $region13
    $region12: #{custum_init_net_forward.1} parent=1 // pred_region
      _
    $region13: #{custum_init_net_forward.1} parent=1 // pred_fallthru
      _
    // Predicated region
    $region14: #{custum_init_net_forward.1} parent=1 // pred_check
      _
    $region15: #{custum_init_net_forward.1} parent=1 // pred_check_branch
      %39 = sbr.rel (0) target = $region17
    $region16: #{custum_init_net_forward.1} parent=1 // pred_region
      %40 = dma.done [#allocation3], 128
    $region17: #{custum_init_net_forward.1} parent=1 // pred_fallthru
      _
    // Predicated region
    $region18: #{custum_init_net_forward.1} parent=1 // pred_check
      _
    $region19: #{custum_init_net_forward.1} parent=1 // pred_check_branch
      %42 = sbr.rel (0) target = $region21
    $region20: #{custum_init_net_forward.1} parent=1 // pred_region
      %43 = dma.done [#allocation6], 1536
    $region21: #{custum_init_net_forward.1} parent=1 // pred_fallthru
      _
    %v44 = vld [vmem:[#allocation2] sm:$0xff]
    %v45 = vld [vmem:[#allocation5] sm:$0xff]
    %v46 = vld [vmem:[#allocation5 + $0x8] sm:$0xff]
    %v47 = vld [vmem:[#allocation5 + $0x10] sm:$0xff]
    %v48 = vld [vmem:[#allocation5 + $0x18] sm:$0xff]
    %v49 = vld [vmem:[%s2] sm:$0x1]
    %v51 = vlaneseq
    %v52 = vshrl.u32 %v51, 7
    %v53 = vsub.s32 0, %v52
    %v54 = vrot.slane %v49, %v53
    %vm56 = vcmask 261120
    %v58 = vsel %vm56, %v44, 0
    %60 = vmatprep.subr.mxu0 0.0
    %61 = vmatpush1.msra.mxu0 0.0
    %62 = vmatprep.subr.mxu0 0.0
    %63 = vmatpush1.msra.mxu0 0.0
    %64 = vmatprep.subr.mxu0 0.0
    %65 = vmatpush1.msra.mxu0 0.0
    %66 = vmatprep.subr.mxu0 0.0
    %67 = vmatpush1.msra.mxu0 0.0
    %68 = vmatprep.subr.mxu0 0.0
    %69 = vmatpush1.msra.mxu0 0.0
    %70 = vmatprep.subr.mxu0 0.0
    %71 = vmatpush1.msra.mxu0 0.0
    %72 = vmatprep.subr.mxu0 0.0
    %73 = vmatpush1.msra.mxu0 0.0
    %74 = vmatprep.subr.mxu0 0.0
    %75 = vmatpush1.msra.mxu0 0.0
    %76 = vmatprep.subr.mxu0 0.0
    %77 = vmatpush1.msra.mxu0 0.0
    %78 = vmatprep.subr.mxu0 0.0
    %79 = vmatpush1.msra.mxu0 0.0
    %80 = vmatprep.subr.mxu0 0.0
    %81 = vmatpush1.msra.mxu0 0.0
    %82 = vmatprep.subr.mxu0 0.0
    %83 = vmatpush1.msra.mxu0 0.0
    %84 = vmatprep.subr.mxu0 0.0
    %85 = vmatpush1.msra.mxu0 %v48
    %86 = vmatprep.subr.mxu0 0.0
    %87 = vmatpush1.msra.mxu0 %v47
    %88 = vmatprep.subr.mxu0 0.0
    %89 = vmatpush1.msra.mxu0 %v46
    %90 = vmatprep.subr.mxu0 0.0
    %91 = vmatpush1.msra.mxu0 %v45
    %92 = vmatprep.subr.mxu0 0.0
    %93 = vmatpush2.msra.mxu0 0.0
    %94 = vmatprep.subr.mxu0 0.0
    %95 = vmatpush2.msra.mxu0 0.0
    %96 = vmatprep.subr.mxu0 0.0
    %97 = vmatpush2.msra.mxu0 0.0
    %98 = vmatprep.subr.mxu0 0.0
    %99 = vmatpush2.msra.mxu0 0.0
    %100 = vmatprep.subr.mxu0 0.0
    %101 = vmatpush2.msra.mxu0 0.0
    %102 = vmatprep.subr.mxu0 0.0
    %103 = vmatpush2.msra.mxu0 0.0
    %104 = vmatprep.subr.mxu0 0.0
    %105 = vmatpush2.msra.mxu0 0.0
    %106 = vmatprep.subr.mxu0 0.0
    %107 = vmatpush2.msra.mxu0 0.0
    %108 = vmatprep.subr.mxu0 0.0
    %109 = vmatpush2.msra.mxu0 0.0
    %110 = vmatprep.subr.mxu0 0.0
    %111 = vmatpush2.msra.mxu0 0.0
    %112 = vmatprep.subr.mxu0 0.0
    %113 = vmatpush2.msra.mxu0 0.0
    %114 = vmatprep.subr.mxu0 0.0
    %115 = vmatpush2.msra.mxu0 0.0
    %116 = vmatprep.subr.mxu0 0.0
    %117 = vmatpush2.msra.mxu0 0.0
    %118 = vmatprep.subr.mxu0 0.0
    %119 = vmatpush2.msra.mxu0 0.0
    %120 = vmatprep.subr.mxu0 0.0
    %121 = vmatpush2.msra.mxu0 0.0
    %122 = vmatprep.subr.mxu0 0.0
    %123 = vmatpush2.msra.mxu0 0.0
    %124 = vmatprep.mubr.f32.mxu0 0.0
    %125 = vmatmul.mubr.f32.gmra.mxu0 %v58
    %v126 = vpop.f32.mrf.mxu0
    %v127 = vadd.f32 %v54, %v126
    %v128 = vpop.f32.mrf.mxu0
    %129 = vdwg.mxu0
    %v130 = vmax.f32 %v127, 0.0
    %131 = vst.msk [vmem:[#allocation8] sm:$0xff] %vm56, %v130
    %s132 = scalar_lea.vmem [#allocation5], 32
    %v133 = vld [vmem:[%s132] sm:$0xff]
    %v134 = vld [vmem:[%s132 + $0x8] sm:$0xff]
    %v135 = vld [vmem:[%s132 + $0x10] sm:$0xff]
    %v136 = vld [vmem:[%s132 + $0x18] sm:$0xff]
    %s137 = scalar_lea.vmem %s2, 1
    %v138 = vld [vmem:[%s137] sm:$0x1]
    %v140 = vlaneseq
    %v141 = vshrl.u32 %v140, 7
    %v142 = vsub.s32 0, %v141
    %v143 = vrot.slane %v138, %v142
    %v146 = vsel %vm56, %v130, 0
    %148 = vmatprep.subr.mxu0 0.0
    %149 = vmatpush1.msra.mxu0 0.0
    %150 = vmatprep.subr.mxu0 0.0
    %151 = vmatpush1.msra.mxu0 0.0
    %152 = vmatprep.subr.mxu0 0.0
    %153 = vmatpush1.msra.mxu0 0.0
    %154 = vmatprep.subr.mxu0 0.0
    %155 = vmatpush1.msra.mxu0 0.0
    %156 = vmatprep.subr.mxu0 0.0
    %157 = vmatpush1.msra.mxu0 0.0
    %158 = vmatprep.subr.mxu0 0.0
    %159 = vmatpush1.msra.mxu0 0.0
    %160 = vmatprep.subr.mxu0 0.0
    %161 = vmatpush1.msra.mxu0 0.0
    %162 = vmatprep.subr.mxu0 0.0
    %163 = vmatpush1.msra.mxu0 0.0
    %164 = vmatprep.subr.mxu0 0.0
    %165 = vmatpush1.msra.mxu0 0.0
    %166 = vmatprep.subr.mxu0 0.0
    %167 = vmatpush1.msra.mxu0 0.0
    %168 = vmatprep.subr.mxu0 0.0
    %169 = vmatpush1.msra.mxu0 0.0
    %170 = vmatprep.subr.mxu0 0.0
    %171 = vmatpush1.msra.mxu0 0.0
    %172 = vmatprep.subr.mxu0 0.0
    %173 = vmatpush1.msra.mxu0 %v136
    %174 = vmatprep.subr.mxu0 0.0
    %175 = vmatpush1.msra.mxu0 %v135
    %176 = vmatprep.subr.mxu0 0.0
    %177 = vmatpush1.msra.mxu0 %v134
    %178 = vmatprep.subr.mxu0 0.0
    %179 = vmatpush1.msra.mxu0 %v133
    %180 = vmatprep.subr.mxu0 0.0
    %181 = vmatpush2.msra.mxu0 0.0
    %182 = vmatprep.subr.mxu0 0.0
    %183 = vmatpush2.msra.mxu0 0.0
    %184 = vmatprep.subr.mxu0 0.0
    %185 = vmatpush2.msra.mxu0 0.0
    %186 = vmatprep.subr.mxu0 0.0
    %187 = vmatpush2.msra.mxu0 0.0
    %188 = vmatprep.subr.mxu0 0.0
    %189 = vmatpush2.msra.mxu0 0.0
    %190 = vmatprep.subr.mxu0 0.0
    %191 = vmatpush2.msra.mxu0 0.0
    %192 = vmatprep.subr.mxu0 0.0
    %193 = vmatpush2.msra.mxu0 0.0
    %194 = vmatprep.subr.mxu0 0.0
    %195 = vmatpush2.msra.mxu0 0.0
    %196 = vmatprep.subr.mxu0 0.0
    %197 = vmatpush2.msra.mxu0 0.0
    %198 = vmatprep.subr.mxu0 0.0
    %199 = vmatpush2.msra.mxu0 0.0
    %200 = vmatprep.subr.mxu0 0.0
    %201 = vmatpush2.msra.mxu0 0.0
    %202 = vmatprep.subr.mxu0 0.0
    %203 = vmatpush2.msra.mxu0 0.0
    %204 = vmatprep.subr.mxu0 0.0
    %205 = vmatpush2.msra.mxu0 0.0
    %206 = vmatprep.subr.mxu0 0.0
    %207 = vmatpush2.msra.mxu0 0.0
    %208 = vmatprep.subr.mxu0 0.0
    %209 = vmatpush2.msra.mxu0 0.0
    %210 = vmatprep.subr.mxu0 0.0
    %211 = vmatpush2.msra.mxu0 0.0
    %212 = vmatprep.mubr.f32.mxu0 0.0
    %213 = vmatmul.mubr.f32.gmra.mxu0 %v146
    %v214 = vpop.f32.mrf.mxu0
    %v215 = vadd.f32 %v143, %v214
    %v216 = vpop.f32.mrf.mxu0
    %217 = vdwg.mxu0
    %v218 = vmax.f32 %v215, 0.0
    %s219 = scalar_lea.vmem [#allocation8], 8
    %220 = vst.msk [vmem:[%s219] sm:$0xff] %vm56, %v218
    %s221 = scalar_lea.vmem [#allocation5], 64
    %v222 = vld [vmem:[%s221] sm:$0xff]
    %v223 = vld [vmem:[%s221 + $0x8] sm:$0xff]
    %v224 = vld [vmem:[%s221 + $0x10] sm:$0xff]
    %v225 = vld [vmem:[%s221 + $0x18] sm:$0xff]
    %s226 = scalar_lea.vmem %s2, 2
    %v227 = vld [vmem:[%s226] sm:$0x1]
    %v229 = vlaneseq
    %v230 = vshrl.u32 %v229, 7
    %v231 = vsub.s32 0, %v230
    %v232 = vrot.slane %v227, %v231
    %v235 = vsel %vm56, %v218, 0
    %237 = vmatprep.subr.mxu0 0.0
    %238 = vmatpush1.msra.mxu0 0.0
    %239 = vmatprep.subr.mxu0 0.0
    %240 = vmatpush1.msra.mxu0 0.0
    %241 = vmatprep.subr.mxu0 0.0
    %242 = vmatpush1.msra.mxu0 0.0
    %243 = vmatprep.subr.mxu0 0.0
    %244 = vmatpush1.msra.mxu0 0.0
    %245 = vmatprep.subr.mxu0 0.0
    %246 = vmatpush1.msra.mxu0 0.0
    %247 = vmatprep.subr.mxu0 0.0
    %248 = vmatpush1.msra.mxu0 0.0
    %249 = vmatprep.subr.mxu0 0.0
    %250 = vmatpush1.msra.mxu0 0.0
    %251 = vmatprep.subr.mxu0 0.0
    %252 = vmatpush1.msra.mxu0 0.0
    %253 = vmatprep.subr.mxu0 0.0
    %254 = vmatpush1.msra.mxu0 0.0
    %255 = vmatprep.subr.mxu0 0.0
    %256 = vmatpush1.msra.mxu0 0.0
    %257 = vmatprep.subr.mxu0 0.0
    %258 = vmatpush1.msra.mxu0 0.0
    %259 = vmatprep.subr.mxu0 0.0
    %260 = vmatpush1.msra.mxu0 0.0
    %261 = vmatprep.subr.mxu0 0.0
    %262 = vmatpush1.msra.mxu0 %v225
    %263 = vmatprep.subr.mxu0 0.0
    %264 = vmatpush1.msra.mxu0 %v224
    %265 = vmatprep.subr.mxu0 0.0
    %266 = vmatpush1.msra.mxu0 %v223
    %267 = vmatprep.subr.mxu0 0.0
    %268 = vmatpush1.msra.mxu0 %v222
    %269 = vmatprep.subr.mxu0 0.0
    %270 = vmatpush2.msra.mxu0 0.0
    %271 = vmatprep.subr.mxu0 0.0
    %272 = vmatpush2.msra.mxu0 0.0
    %273 = vmatprep.subr.mxu0 0.0
    %274 = vmatpush2.msra.mxu0 0.0
    %275 = vmatprep.subr.mxu0 0.0
    %276 = vmatpush2.msra.mxu0 0.0
    %277 = vmatprep.subr.mxu0 0.0
    %278 = vmatpush2.msra.mxu0 0.0
    %279 = vmatprep.subr.mxu0 0.0
    %280 = vmatpush2.msra.mxu0 0.0
    %281 = vmatprep.subr.mxu0 0.0
    %282 = vmatpush2.msra.mxu0 0.0
    %283 = vmatprep.subr.mxu0 0.0
    %284 = vmatpush2.msra.mxu0 0.0
    %285 = vmatprep.subr.mxu0 0.0
    %286 = vmatpush2.msra.mxu0 0.0
    %287 = vmatprep.subr.mxu0 0.0
    %288 = vmatpush2.msra.mxu0 0.0
    %289 = vmatprep.subr.mxu0 0.0
    %290 = vmatpush2.msra.mxu0 0.0
    %291 = vmatprep.subr.mxu0 0.0
    %292 = vmatpush2.msra.mxu0 0.0
    %293 = vmatprep.subr.mxu0 0.0
    %294 = vmatpush2.msra.mxu0 0.0
    %295 = vmatprep.subr.mxu0 0.0
    %296 = vmatpush2.msra.mxu0 0.0
    %297 = vmatprep.subr.mxu0 0.0
    %298 = vmatpush2.msra.mxu0 0.0
    %299 = vmatprep.subr.mxu0 0.0
    %300 = vmatpush2.msra.mxu0 0.0
    %301 = vmatprep.mubr.f32.mxu0 0.0
    %302 = vmatmul.mubr.f32.gmra.mxu0 %v235
    %v303 = vpop.f32.mrf.mxu0
    %v304 = vadd.f32 %v232, %v303
    %v305 = vpop.f32.mrf.mxu0
    %306 = vdwg.mxu0
    %v307 = vmax.f32 %v304, 0.0
    %s308 = scalar_lea.vmem [#allocation8], 16
    %309 = vst.msk [vmem:[%s308] sm:$0xff] %vm56, %v307
    %310 = vst.msk [vmem:[#allocation7] sm:$0xff] %vm56, %v307
    // Predicated region
    $region22: #{custum_init_net_forward.1} parent=1 // pred_check
      _
    $region23: #{custum_init_net_forward.1} parent=1 // pred_check_branch
      %312 = sbr.rel (0) target = $region25
    $region24: #{custum_init_net_forward.1} parent=1 // pred_region
      %s314 = ssub.s32 128, 128
      %315 = vsyncadd [#allocation4], %s314
      %s317 = sshll.u32 [#allocation7], 4
      %s318 = int_to_ptr.vmem [resolvable:$true] %s317
      %320 = dma.vmem_to_hbm [thread:$0]  %s318, 128, %s3, [#allocation4]
    $region25: #{custum_init_net_forward.1} parent=1 // pred_fallthru
      _
    // Predicated region
    $region26: #{custum_init_net_forward.1} parent=1 // pred_check
      _
    $region27: #{custum_init_net_forward.1} parent=1 // pred_check_branch
      %322 = sbr.rel (0) target = $region29
    $region28: #{custum_init_net_forward.1} parent=1 // pred_region
      %s324 = ssub.s32 384, 384
      %325 = vsyncadd [#allocation9], %s324
      %s326 = sshll.u32 [#allocation8], 4
      %s327 = int_to_ptr.vmem [resolvable:$true] %s326
      %332 = dma.vmem_to_hbm [thread:$0]  %s327, 384, %s4, [#allocation9], 128, 128, 8
    $region29: #{custum_init_net_forward.1} parent=1 // pred_fallthru
      _
    // Predicated region
    $region30: #{custum_init_net_forward.1} parent=1 // pred_check
      _
    $region31: #{custum_init_net_forward.1} parent=1 // pred_check_branch
      %334 = sbr.rel (0) target = $region33
    $region32: #{custum_init_net_forward.1} parent=1 // pred_region
      %335 = dma.done [#allocation4], 128
    $region33: #{custum_init_net_forward.1} parent=1 // pred_fallthru
      _
    // Predicated region
    $region34: #{custum_init_net_forward.1} parent=1 // pred_check
      _
    $region35: #{custum_init_net_forward.1} parent=1 // pred_check_branch
      %337 = sbr.rel (0) target = $region37
    $region36: #{custum_init_net_forward.1} parent=1 // pred_region
      %338 = dma.done [#allocation9], 384
    $region37: #{custum_init_net_forward.1} parent=1 // pred_fallthru
      _
    %339 = vsyncpa [#allocation3], 1
    %340 = vsyncpa [#allocation6], 1
    %341 = vsyncpa [#allocation4], 1
    %342 = vsyncpa [#allocation9], 1

</llo_original>
